<compile_context>
chip_gen: v5e
topology: v5e:2x2
jax: 0.10.0
libtpu: 0.0.40
codegen_flags: <defaults>
</compile_context>

<pallas_src>
import functools

import jax
import jax.numpy as jnp
from jax.experimental import pallas as pl
from jax.experimental.pallas import tpu as pltpu

_NAN = float("nan")          # python literal -> never a captured jax constant
_LANE_MULT = 512             # pad B*T up to a multiple of this
_TILE_CANDIDATES = (2048, 1024, 512)
_N_SQUARINGS = 12            # (N + s*I)^(2^12): dominant eigenvector via squaring


# --------------------------------------------------------------------------
# Layout helpers (fused into the surrounding jit)
# --------------------------------------------------------------------------
def _lane_pad(x, pad):
    if pad == 0:
        return x
    return jnp.pad(x, [(0, 0)] * (x.ndim - 1) + [(0, pad)])


def _lane_tiling(nbt):
    n_padded = ((nbt + _LANE_MULT - 1) // _LANE_MULT) * _LANE_MULT
    tn = _LANE_MULT
    for cand in _TILE_CANDIDATES:
        if n_padded % cand == 0:
            tn = cand
            break
    return n_padded, tn


# TODO(synk): if the upstream model can emit joints channel-first (K,3,J,B*T)
# these full-HBM-pass transposes disappear entirely.
def _pred_to_lane_dense(joint, n_padded):
    # (K, B, T, J, 3) -> (K, 3, J, Np)
    K, B, T, J, _ = joint.shape
    x = joint.astype(jnp.float32).reshape(K, B * T, J, 3).transpose(0, 3, 2, 1)
    return _lane_pad(x, n_padded - B * T)


def _gt_to_lane_dense(gt, n_padded):
    # (B, T, J, 3) -> (3, J, Np)
    B, T, J, _ = gt.shape
    x = gt.astype(jnp.float32).reshape(B * T, J, 3).transpose(2, 1, 0)
    return _lane_pad(x, n_padded - B * T)


def _valid_to_lane_dense(valid, n_padded):
    # (B, T, J) / (B, T, J, 1) -> (J, Np) float32 {0, 1}
    if valid.ndim == 4:
        valid = valid[..., 0]
    B, T, J = valid.shape
    x = valid.astype(jnp.float32).reshape(B * T, J).T
    return _lane_pad(x, n_padded - B * T)


# --------------------------------------------------------------------------
# Kernel: masked per-frame mean JPE (train path; pred/gt/valid read once)
# --------------------------------------------------------------------------
def _mpjpe_kernel(j_ref, g_ref, v_ref, mpjpe_ref):
    j = j_ref[...]                                            # (3, J, tn)
    g = g_ref[...]
    v = v_ref[...]                                            # (J, tn) in {0,1}
    d = j - g
    jpe = jnp.sqrt(d[0] * d[0] + d[1] * d[1] + d[2] * d[2]) * 1000.0   # (J, tn)
    cnt = jnp.sum(v, axis=0, keepdims=True)                   # (1, tn)
    inv = pl.reciprocal(jnp.maximum(cnt, 1.0), approx=True)   # EUP; metric only
    mpjpe_ref[...] = jnp.where(cnt > 0.0,
                               jnp.sum(jpe * v, axis=0, keepdims=True) * inv,
                               _NAN)


def _masked_mpjpe_impl(joint, gt_joint, joint_valid):
    K, B, T, J, _ = joint.shape
    nbt = B * T
    n_padded, tn = _lane_tiling(nbt)
    pred = _pred_to_lane_dense(joint, n_padded)               # (K, 3, J, Np)
    gt = _gt_to_lane_dense(gt_joint, n_padded)                # (3, J, Np)
    val = _valid_to_lane_dense(joint_valid, n_padded)         # (J, Np)

    mpjpe = pl.pallas_call(
        _mpjpe_kernel,
        out_shape=jax.ShapeDtypeStruct((K, 1, n_padded), jnp.float32),
        grid=(n_padded // tn, K),           # k innermost: gt/valid stay VMEM-resident
        in_specs=[pl.BlockSpec((None, 3, J, tn), lambda t, k: (k, 0, 0, t)),
                  pl.BlockSpec((3, J, tn), lambda t, k: (0, 0, t)),
                  pl.BlockSpec((J, tn), lambda t, k: (0, t))],
        out_specs=pl.BlockSpec((None, 1, tn), lambda t, k: (k, 0, t)),
        compiler_params=pltpu.CompilerParams(
            dimension_semantics=("parallel", "parallel")),
    )(pred, gt, val)
    return mpjpe[:, 0, :nbt].reshape(K, B, T)


masked_mpjpe = jax.jit(_masked_mpjpe_impl)


# --------------------------------------------------------------------------
# Kernel: fused mpjpe + masked (uncentered, matching the torch ref) covariance
# --------------------------------------------------------------------------
def _cov_mpjpe_kernel(j_ref, g_ref, v_ref, mpjpe_ref, ccov_ref):
    j = j_ref[...]                                            # (3, J, tn)
    g = g_ref[...]
    v = v_ref[...]                                            # (J, tn)
    cnt = jnp.sum(v, axis=0, keepdims=True)                   # (1, tn)
    inv = pl.reciprocal(jnp.maximum(cnt, 1.0), approx=True)
    d = j - g
    jpe = jnp.sqrt(d[0] * d[0] + d[1] * d[1] + d[2] * d[2]) * 1000.0
    mpjpe_ref[...] = jnp.where(cnt > 0.0,
                               jnp.sum(jpe * v, axis=0, keepdims=True) * inv,
                               _NAN)
    jm = (j[0] * v, j[1] * v, j[2] * v)                       # masked_fill(~valid, 0)
    gm = (g[0] * v, g[1] * v, g[2] * v)
    # C[a, b] = sum_j jm[a, j] * gm[b, j]  -> 9 lane-dense rows, row 3a+b
    for a in range(3):
        for b in range(3):
            ccov_ref[3 * a + b:3 * a + b + 1, :] = jnp.sum(
                jm[a] * gm[b], axis=0, keepdims=True)


# --------------------------------------------------------------------------
# Kernel: rotation apply + masked aligned error.  Re-derives the centering
# from the raw tiles (no jc/gc HBM round-trip); optional full outputs.
# --------------------------------------------------------------------------
def _make_pa_err_kernel(emit_all):
    def kernel(j_ref, g_ref, v_ref, rot_ref, pa_ref, *rest):
        j = j_ref[...]                                        # (3, J, tn)
        g = g_ref[...]
        v = v_ref[...]                                        # (J, tn)
        r = rot_ref[...]                                      # (9, tn), row 3a+b = R[a,b]
        cnt = jnp.sum(v, axis=0, keepdims=True)               # (1, tn)
        # exact reciprocal: feeds the covariance->rotation->alignment path
        inv = 1.0 / jnp.maximum(cnt, 1.0)
        v3 = v[None]                                          # (1, J, tn)
        j_mean = jnp.sum(j * v3, axis=1, keepdims=True) * inv[None]   # (3,1,tn)
        g_mean = jnp.sum(g * v3, axis=1, keepdims=True) * inv[None]
        jc = j - j_mean
        gc = g - g_mean
        al0 = jc[0] * r[0:1] + jc[1] * r[1:2] + jc[2] * r[2:3]        # (J, tn)
        al1 = jc[0] * r[3:4] + jc[1] * r[4:5] + jc[2] * r[5:6]
        al2 = jc[0] * r[6:7] + jc[1] * r[7:8] + jc[2] * r[8:9]
        d0 = al0 - gc[0]
        d1 = al1 - gc[1]
        d2 = al2 - gc[2]
        pa = jnp.sqrt(d0 * d0 + d1 * d1 + d2 * d2) * 1000.0
        pa_ref[...] = jnp.where(v > 0.0, pa, _NAN)
        if emit_all:
            aligned_ref, jc_ref = rest
            aligned_ref[0, :, :] = al0
            aligned_ref[1, :, :] = al1
            aligned_ref[2, :, :] = al2
            jc_ref[...] = jc
    return kernel


# --------------------------------------------------------------------------
# Kernel: gt centering, computed once (k-free grid) -- never duplicated per K
# --------------------------------------------------------------------------
def _gt_center_kernel(g_ref, v_ref, gc_ref):
    g = g_ref[...]
    v = v_ref[...]
    cnt = jnp.sum(v, axis=0, keepdims=True)
    inv = 1.0 / jnp.maximum(cnt, 1.0)
    gc_ref[...] = g - jnp.sum(g * v[None], axis=1, keepdims=True) * inv[None]


# --------------------------------------------------------------------------
# Closed-form Kabsch rotation (Horn quaternion) -- replaces the batched SVD.
# Pure elementwise JAX over the lane-dense (K, 9, Np) covariance rows.
# --------------------------------------------------------------------------
def _kabsch_rot_rows(ccov):
    """ccov (K, 9, N), row 3a+b = S_ab = sum_j j_a*g_b  (masked, uncentered).

    Returns rot rows (K, 9, N), row 3a+b = R[a,b]: the proper rotation that
    maximizes tr(R @ C), i.e. the same rotation as Kabsch-SVD with the
    det-sign column flip used by the torch reference.
    """
    S = [[ccov[:, 3 * a + b] for b in range(3)] for a in range(3)]
    Sxx, Sxy, Sxz = S[0]
    Syx, Syy, Syz = S[1]
    Szx, Szy, Szz = S[2]
    # Horn's symmetric 4x4 matrix (quaternion q maximizes q^T N q).
    N = [[Sxx + Syy + Szz, Syz - Szy,        Szx - Sxz,        Sxy - Syx],
         [Syz - Szy,       Sxx - Syy - Szz,  Sxy + Syx,        Szx + Sxz],
         [Szx - Sxz,       Sxy + Syx,        -Sxx + Syy - Szz, Syz + Szy],
         [Sxy - Syx,       Szx + Sxz,        Syz + Szy,        -Sxx - Syy + Szz]]
    # Shift so N + s*I is PSD and its top eigenvalue is dominant in magnitude:
    # |lambda_i(N)| <= sigma1+sigma2+sigma3 <= sqrt(3)*||C||_F.
    fro2 = sum(S[a][b] * S[a][b] for a in range(3) for b in range(3))
    shift = jnp.sqrt(3.0 * fro2) + 1e-20
    B = [[N[i][k] + (shift if i == k else 0.0) for k in range(4)] for i in range(4)]

    def _norm(M):
        m = jnp.abs(M[0][0])
        for i in range(4):
            for k in range(4):
                m = jnp.maximum(m, jnp.abs(M[i][k]))
        m = jnp.maximum(m, 1e-30)
        return [[M[i][k] / m for k in range(4)] for i in range(4)]

    B = _norm(B)
    for _ in range(_N_SQUARINGS):                      # B <- (B/|B|_max)^2
        B = _norm([[sum(B[i][k] * B[k][j] for k in range(4)) for j in range(4)]
                   for i in range(4)])
    # B ~ q q^T (symmetric, PSD).  Pick the column with the largest diagonal.
    diag = [B[i][i] for i in range(4)]
    best = diag[0]
    col = [B[i][0] for i in range(4)]
    for c in range(1, 4):
        better = diag[c] > best
        col = [jnp.where(better, B[i][c], col[i]) for i in range(4)]
        best = jnp.where(better, diag[c], best)
    qn = jnp.sqrt(col[0] * col[0] + col[1] * col[1] + col[2] * col[2] + col[3] * col[3])
    qn = jnp.maximum(qn, 1e-30)
    w, x, y, z = (c / qn for c in col)
    rot = [w * w + x * x - y * y - z * z, 2.0 * (x * y - w * z),           2.0 * (x * z + w * y),
           2.0 * (x * y + w * z),         w * w - x * x + y * y - z * z,   2.0 * (y * z - w * x),
           2.0 * (x * z - w * y),         2.0 * (y * z + w * x),           w * w - x * x - y * y + z * z]
    return jnp.stack(rot, axis=1)                      # (K, 9, N)


# --------------------------------------------------------------------------
# compute_pa_jpe
# --------------------------------------------------------------------------
def _compute_pa_jpe_impl(joint, gt_joint, valid, return_all, with_mpjpe):
    K, B, T, J, _ = joint.shape
    if valid.ndim == joint.ndim:        # (K,B,T,J,3) expanded like the torch call site
        valid = valid[0]
    nbt = B * T
    n_padded, tn = _lane_tiling(nbt)
    j_ld = _pred_to_lane_dense(joint, n_padded)               # (K, 3, J, Np)
    g_ld = _gt_to_lane_dense(gt_joint, n_padded)              # (3, J, Np)
    v_ld = _valid_to_lane_dense(valid, n_padded)              # (J, Np)
    grid = (n_padded // tn, K)
    cparams = pltpu.CompilerParams(
        dimension_semantics=("parallel", "parallel"))

    pred_spec = pl.BlockSpec((None, 3, J, tn), lambda t, k: (k, 0, 0, t))
    gt_spec = pl.BlockSpec((3, J, tn), lambda t, k: (0, 0, t))
    val_spec = pl.BlockSpec((J, tn), lambda t, k: (0, t))
    row1_spec = pl.BlockSpec((None, 1, tn), lambda t, k: (k, 0, t))
    row9_spec = pl.BlockSpec((None, 9, tn), lambda t, k: (k, 0, t))
    rowJ_spec = pl.BlockSpec((None, J, tn), lambda t, k: (k, 0, t))

    # Kernel 1: one read of pred/gt/valid -> mpjpe + covariance rows.
    mpjpe_ld, ccov = pl.pallas_call(
        _cov_mpjpe_kernel,
        out_shape=(jax.ShapeDtypeStruct((K, 1, n_padded), jnp.float32),
                   jax.ShapeDtypeStruct((K, 9, n_padded), jnp.float32)),
        grid=grid,
        in_specs=[pred_spec, gt_spec, val_spec],
        out_specs=(row1_spec, row9_spec),
        compiler_params=cparams,
    )(j_ld, g_ld, v_ld)

    # Closed-form Kabsch rotation (elementwise JAX; no batched SVD).
    rot_rows = _kabsch_rot_rows(ccov)                         # (K, 9, Np)

    # Kernel 2: centering re-derived in-kernel; optional full outputs.
    if return_all:
        pa_ld, aligned_ld, jc_ld = pl.pallas_call(
            _make_pa_err_kernel(True),
            out_shape=(jax.ShapeDtypeStruct((K, J, n_padded), jnp.float32),
                       jax.ShapeDtypeStruct((K, 3, J, n_padded), jnp.float32),
                       jax.ShapeDtypeStruct((K, 3, J, n_padded), jnp.float32)),
            grid=grid,
            in_specs=[pred_spec, gt_spec, val_spec, row9_spec],
            out_specs=(rowJ_spec, pred_spec, pred_spec),
            compiler_params=cparams,
        )(j_ld, g_ld, v_ld, rot_rows)
    else:
        pa_ld = pl.pallas_call(
            _make_pa_err_kernel(False),
            out_shape=jax.ShapeDtypeStruct((K, J, n_padded), jnp.float32),
            grid=grid,
            in_specs=[pred_spec, gt_spec, val_spec, row9_spec],
            out_specs=rowJ_spec,
            compiler_params=cparams,
        )(j_ld, g_ld, v_ld, rot_rows)

    pa_jpe = pa_ld[:, :, :nbt].transpose(0, 2, 1).reshape(K, B, T, J)
    results = [pa_jpe]

    if return_all:
        def _vec_back(x):      # (K, 3, J, Np) -> (K, B, T, J, 3)
            return x[..., :nbt].transpose(0, 3, 2, 1).reshape(K, B, T, J, 3)

        gc_ld = pl.pallas_call(
            _gt_center_kernel,
            out_shape=jax.ShapeDtypeStruct((3, J, n_padded), jnp.float32),
            grid=(n_padded // tn,),
            in_specs=[pl.BlockSpec((3, J, tn), lambda t: (0, 0, t)),
                      pl.BlockSpec((J, tn), lambda t: (0, t))],
            out_specs=pl.BlockSpec((3, J, tn), lambda t: (0, 0, t)),
            compiler_params=pltpu.CompilerParams(
                dimension_semantics=("parallel",)),
        )(g_ld, v_ld)
        gt_centered = gc_ld[..., :nbt].transpose(2, 1, 0).reshape(B, T, J, 3)
        gt_centered = jnp.broadcast_to(gt_centered[None], (K, B, T, J, 3))
        results += [_vec_back(aligned_ld), gt_centered, _vec_back(jc_ld)]

    if with_mpjpe:
        results.append(mpjpe_ld[:, 0, :nbt].reshape(K, B, T))
    if len(results) == 1:
        return results[0]
    return tuple(results)


@functools.partial(jax.jit, static_argnames=("return_all", "with_mpjpe"))
def compute_pa_jpe(joint, gt_joint, valid, return_all=True, with_mpjpe=False):
    """Pallas/JAX port of compute_pa_jpe.

    joint (K,B,T,J,3); gt_joint (B,T,J,3) (shared across hypotheses);
    valid (B,T,J[,1|,3]) or with leading K.  return_all=True matches the torch
    4-tuple (pa_jpe, joint_aligned, gt_joint_centered, joint_centered);
    return_all=False returns only pa_jpe (no aligned/centered HBM writes);
    with_mpjpe=True appends the masked per-frame mean JPE (K,B,T) for free.
    """
    return _compute_pa_jpe_impl(joint, gt_joint, valid, return_all, with_mpjpe)


# --------------------------------------------------------------------------
# Criterion (train-mode forward), fully jitted so the layout plumbing fuses
# --------------------------------------------------------------------------
@functools.partial(jax.jit, static_argnames=("num_k_select",))
def _criterion_train_metrics(joint, score, gt_joint, joint_valid, *, num_k_select):
    joint = joint.astype(jnp.float32)
    score = score.astype(jnp.float32)
    gt_joint = gt_joint.astype(jnp.float32)

    mpjpe_approx = _masked_mpjpe_impl(joint, gt_joint, joint_valid)     # (K, B, T)

    # reward = softmax(score)[..., 1] == sigmoid(s1 - s0) for two classes.
    reward = jax.nn.sigmoid(score[..., 1] - score[..., 0])              # (K, B, T)

    idx_err = jnp.argsort(mpjpe_approx, axis=0)
    reward_err_sorted = jnp.take_along_axis(reward, idx_err, axis=0)

    KS = num_k_select
    idx_rew = jnp.argsort(-reward, axis=0)                              # descending
    mpjpe_select = jnp.take_along_axis(mpjpe_approx, idx_rew, axis=0)[KS:]

    idx_rew_sorted = jnp.argsort(-reward_err_sorted, axis=0)
    num_hit = (idx_rew_sorted[:KS] < KS).astype(jnp.float32)
    rank = jnp.argsort(idx_rew_sorted, axis=0)[:KS].astype(jnp.float32)

    loss = {}
    # TODO(synk): 'Loss_rm/joint_hm' (CoordLoss) and the JRCLoss reward terms
    # depend on external modules not defined in the reference spec; omitted.
    loss['Info/mpjpe'] = jnp.nanmean(mpjpe_select)
    loss['Info_rm/hit_rate'] = jnp.nanmean(num_hit)
    loss['Info_rm/rank'] = jnp.nanmean(rank)
    for i in range(KS):
        loss[f'Info_rm/hit_rate{i}'] = jnp.nanmean(num_hit[i])
        loss[f'Info_rm/rank{i}'] = jnp.nanmean(rank[i])
    return loss


class CriterionPallas:
    """Pallas/JAX port of Criterion (train-mode metrics)."""

    def __init__(self, num_k_select=2):
        self.ROOT_IDX = 0
        self.JOINT_NUM = 21
        self.num_k_select = num_k_select

    def get_selection_info_simple(self, reward_sorted, joint_valid):
        KS = self.num_k_select
        idx_rew = jnp.argsort(-reward_sorted, axis=0)
        num_hit = (idx_rew[:KS] < KS).astype(jnp.float32)
        rank = jnp.argsort(idx_rew, axis=0)[:KS].astype(jnp.float32)
        rank_valid = (jnp.sum(joint_valid[..., 0], axis=-1) > 0).astype(jnp.float32)
        return num_hit, rank, rank_valid

    def forward(self, preds, targets, meta_info, mode='train'):
        if mode != 'train':
            raise KeyError(mode)
        return _criterion_train_metrics(
            preds['joint'], preds['score'], targets['joint_cam'],
            meta_info['joint_valid'], num_k_select=self.num_k_select)

    __call__ = forward


# --------------------------------------------------------------------------
# float64 NumPy port of the torch reference (for the self-check only)
# --------------------------------------------------------------------------
def _reference_np(joint, gt_joint, joint_valid):
    import numpy as np
    import warnings
    j = np.asarray(joint, dtype=np.float64)
    g = np.broadcast_to(np.asarray(gt_joint, dtype=np.float64)[None], j.shape)
    v = np.asarray(joint_valid)
    if v.ndim == j.ndim:
        v = v[0]
    if v.ndim == 4:
        v = v[..., 0]
    v = v.astype(bool)                                        # (B, T, J)
    v3 = np.broadcast_to(v[None, ..., None], j.shape)         # (K, B, T, J, 3)
    with warnings.catch_warnings():
        warnings.simplefilter("ignore")
        jpe = np.sqrt(np.sum((j - g) ** 2, axis=-1)) * 1000.0
        jpe = np.where(v3[..., 0], jpe, np.nan)
        mpjpe = np.nanmean(jpe, axis=-1)
        j_mean = np.nanmean(np.where(v3, j, np.nan), axis=-2, keepdims=True)
        g_mean = np.nanmean(np.where(v3, g, np.nan), axis=-2, keepdims=True)
        jc = j - j_mean
        gc = g - g_mean
        jm = np.where(v3, j, 0.0)
        gm = np.where(v3, g, 0.0)
        C = np.einsum('...ja,...jb->...ab', jm, gm)
        U, _, Vh = np.linalg.svd(C)
        V = np.swapaxes(Vh, -1, -2)
        rot = V @ np.swapaxes(U, -1, -2)
        det = np.linalg.det(rot)
        V[..., -1] *= np.where(det < 0.0, -1.0, 1.0)[..., None]
        rot = V @ np.swapaxes(U, -1, -2)
        aligned = np.einsum('...ab,...jb->...ja', rot, jc)
        pa = np.sqrt(np.sum((aligned - gc) ** 2, axis=-1)) * 1000.0
        pa = np.where(v3[..., 0], pa, np.nan)
    return pa, mpjpe


def _assert_close(name, got, want, rtol=1e-2, atol=5e-2):
    import numpy as np
    got = np.asarray(got, dtype=np.float64)
    want = np.asarray(want, dtype=np.float64)
    finite = np.isfinite(want)
    if not np.array_equal(finite, np.isfinite(got)):
        raise AssertionError(f"{name}: NaN pattern mismatch")
    err = np.abs(got[finite] - want[finite])
    tol = atol + rtol * np.abs(want[finite])
    if err.size and not np.all(err <= tol):
        raise AssertionError(f"{name}: max abs err {float(err.max()):.4e}")


if __name__ == "__main__":
    key = jax.random.PRNGKey(0)
    K, B, T, J = 4, 2, 3, 21          # hypotheses, batch, time, MANO joints
    num_k_select = 2
    k1, k2, k3, k4 = jax.random.split(key, 4)

    joint = 0.05 * jax.random.normal(k1, (K, B, T, J, 3), jnp.float32)
    gt_joint = 0.05 * jax.random.normal(k2, (B, T, J, 3), jnp.float32)
    score = jax.random.normal(k3, (K, B, T, 2), jnp.float32)
    joint_valid = (jax.random.uniform(k4, (B, T, J, 1)) > 0.2).astype(jnp.float32)

    crit = CriterionPallas(num_k_select=num_k_select)
    loss = crit.forward({'joint': joint, 'score': score},
                        {'joint_cam': gt_joint},
                        {'joint_valid': joint_valid}, mode='train')
    loss = {k: jax.block_until_ready(v) for k, v in loss.items()}

    # Standalone mpjpe kernel (train path).
    mpjpe = jax.block_until_ready(masked_mpjpe(joint, gt_joint, joint_valid))

    # Fused PA path: fast variant (pa_jpe + mpjpe only, no aligned/centered
    # writes) ...
    pa_fast, mpjpe_fused = compute_pa_jpe(joint, gt_joint, joint_valid > 0,
                                          return_all=False, with_mpjpe=True)
    # ... and the full torch-parity variant.
    pa_jpe, joint_aligned, gt_centered, joint_centered = compute_pa_jpe(
        joint, gt_joint, joint_valid > 0, return_all=True, with_mpjpe=False)
    jax.block_until_ready((pa_fast, mpjpe_fused, pa_jpe, joint_aligned,
                           gt_centered, joint_centered))

    # Numerical self-check against a float64 NumPy port of the torch reference.
    pa_ref, mpjpe_ref = _reference_np(joint, gt_joint, joint_valid)
    _assert_close("mpjpe", mpjpe, mpjpe_ref)
    _assert_close("mpjpe_fused", mpjpe_fused, mpjpe_ref)
    _assert_close("pa_jpe", pa_jpe, pa_ref)
    _assert_close("pa_jpe_fast", pa_fast, pa_ref)
    for v in loss.values():
        if not bool(jnp.isfinite(v)):
            raise AssertionError("non-finite loss metric")

    print("KERNEL_OK")
</pallas_src>

<mosaic_0001>
module attributes {stable_mosaic.version = 11 : i64} {
  func.func @_mpjpe_kernel(%arg0: i32, %arg1: i32, %arg2: memref<1x3x21x512xf32, #tpu.memory_space<vmem>>, %arg3: memref<3x21x512xf32, #tpu.memory_space<vmem>>, %arg4: memref<21x512xf32, #tpu.memory_space<vmem>>, %arg5: memref<1x1x512xf32, #tpu.memory_space<vmem>>) attributes {dimension_semantics = [#tpu.dimension_semantics<parallel>, #tpu.dimension_semantics<parallel>], iteration_bounds = array<i64: 1, 4>, scalar_prefetch = 0 : i64, scratch_operands = 0 : i64, tpu.core_type = #tpu.core_type<tc>, window_params = [{transform_indices = @transform_0, window_bounds = array<i64: 1, 3, 21, 512>}, {transform_indices = @transform_1, window_bounds = array<i64: 3, 21, 512>}, {transform_indices = @transform_2, window_bounds = array<i64: 21, 512>}, {transform_indices = @transform_3, window_bounds = array<i64: 1, 1, 512>}]} {
    %c0 = arith.constant 0 : index
    %c0_0 = arith.constant 0 : index
    %c0_1 = arith.constant 0 : index
    %c0_2 = arith.constant 0 : index
    %0 = vector.load %arg2[%c0, %c0_0, %c0_1, %c0_2] : memref<1x3x21x512xf32, #tpu.memory_space<vmem>>, vector<1x3x21x512xf32>
    %1 = vector.shape_cast %0 : vector<1x3x21x512xf32> to vector<3x21x512xf32>
    %c0_3 = arith.constant 0 : index
    %c0_4 = arith.constant 0 : index
    %c0_5 = arith.constant 0 : index
    %2 = vector.load %arg3[%c0_3, %c0_4, %c0_5] : memref<3x21x512xf32, #tpu.memory_space<vmem>>, vector<3x21x512xf32>
    %c0_6 = arith.constant 0 : index
    %c0_7 = arith.constant 0 : index
    %3 = vector.load %arg4[%c0_6, %c0_7] : memref<21x512xf32, #tpu.memory_space<vmem>>, vector<21x512xf32>
    %4 = arith.subf %1, %2 : vector<3x21x512xf32>
    %5 = vector.extract_strided_slice %4 {offsets = [0, 0, 0], sizes = [1, 21, 512], strides = [1, 1, 1]} : vector<3x21x512xf32> to vector<1x21x512xf32>
    %6 = vector.shape_cast %5 : vector<1x21x512xf32> to vector<21x512xf32>
    %7 = vector.extract_strided_slice %4 {offsets = [0, 0, 0], sizes = [1, 21, 512], strides = [1, 1, 1]} : vector<3x21x512xf32> to vector<1x21x512xf32>
    %8 = vector.shape_cast %7 : vector<1x21x512xf32> to vector<21x512xf32>
    %9 = arith.mulf %6, %8 : vector<21x512xf32>
    %10 = vector.extract_strided_slice %4 {offsets = [1, 0, 0], sizes = [1, 21, 512], strides = [1, 1, 1]} : vector<3x21x512xf32> to vector<1x21x512xf32>
    %11 = vector.shape_cast %10 : vector<1x21x512xf32> to vector<21x512xf32>
    %12 = vector.extract_strided_slice %4 {offsets = [1, 0, 0], sizes = [1, 21, 512], strides = [1, 1, 1]} : vector<3x21x512xf32> to vector<1x21x512xf32>
    %13 = vector.shape_cast %12 : vector<1x21x512xf32> to vector<21x512xf32>
    %14 = arith.mulf %11, %13 : vector<21x512xf32>
    %15 = arith.addf %9, %14 : vector<21x512xf32>
    %16 = vector.extract_strided_slice %4 {offsets = [2, 0, 0], sizes = [1, 21, 512], strides = [1, 1, 1]} : vector<3x21x512xf32> to vector<1x21x512xf32>
    %17 = vector.shape_cast %16 : vector<1x21x512xf32> to vector<21x512xf32>
    %18 = vector.extract_strided_slice %4 {offsets = [2, 0, 0], sizes = [1, 21, 512], strides = [1, 1, 1]} : vector<3x21x512xf32> to vector<1x21x512xf32>
    %19 = vector.shape_cast %18 : vector<1x21x512xf32> to vector<21x512xf32>
    %20 = arith.mulf %17, %19 : vector<21x512xf32>
    %21 = arith.addf %15, %20 : vector<21x512xf32>
    %22 = math.sqrt %21 : vector<21x512xf32>
    %cst = arith.constant 1.000000e+03 : f32
    %23 = vector.broadcast %cst : f32 to vector<21x512xf32>
    %24 = arith.mulf %22, %23 : vector<21x512xf32>
    %cst_8 = arith.constant dense<0.000000e+00> : vector<512xf32>
    %25 = vector.multi_reduction <add>, %3, %cst_8 [0] : vector<21x512xf32> to vector<512xf32>
    %26 = vector.shape_cast %25 : vector<512xf32> to vector<1x512xf32>
    %cst_9 = arith.constant 1.000000e+00 : f32
    %27 = vector.broadcast %cst_9 : f32 to vector<1x512xf32>
    %28 = arith.maximumf %26, %27 : vector<1x512xf32>
    %29 = tpu.reciprocal %28 {approx = true} : vector<1x512xf32> -> vector<1x512xf32>
    %cst_10 = arith.constant 0.000000e+00 : f32
    %30 = vector.broadcast %cst_10 : f32 to vector<1x512xf32>
    %31 = arith.cmpf ogt, %26, %30 : vector<1x512xf32>
    %32 = arith.mulf %24, %3 : vector<21x512xf32>
    %cst_11 = arith.constant dense<0.000000e+00> : vector<512xf32>
    %33 = vector.multi_reduction <add>, %32, %cst_11 [0] : vector<21x512xf32> to vector<512xf32>
    %34 = vector.shape_cast %33 : vector<512xf32> to vector<1x512xf32>
    %35 = arith.mulf %34, %29 : vector<1x512xf32>
    %cst_12 = arith.constant 0x7FC00000 : f32
    %36 = vector.broadcast %cst_12 : f32 to vector<1x512xf32>
    %37 = arith.select %31, %35, %36 : vector<1x512xi1>, vector<1x512xf32>
    %c0_13 = arith.constant 0 : index
    %c0_14 = arith.constant 0 : index
    %c0_15 = arith.constant 0 : index
    %38 = vector.load %arg5[%c0_13, %c0_14, %c0_15] : memref<1x1x512xf32, #tpu.memory_space<vmem>>, vector<1x1x512xf32>
    %39 = vector.shape_cast %38 : vector<1x1x512xf32> to vector<1x512xf32>
    %40 = vector.shape_cast %37 : vector<1x512xf32> to vector<1x1x512xf32>
    tpu.vector_store %arg5[%c0_13, %c0_14, %c0_15], %40 {strides = array<i32>} : memref<1x1x512xf32, #tpu.memory_space<vmem>>, vector<1x1x512xf32>,
    return
  }
  func.func @transform_0(%arg0: i32, %arg1: i32) -> (i32, i32, i32, i32) {
    %c0_i32 = arith.constant 0 : i32
    %c0_i32_0 = arith.constant 0 : i32
    %c0_i32_1 = arith.constant 0 : i32
    return %arg1, %c0_i32, %c0_i32_0, %arg0 : i32, i32, i32, i32
  }
  func.func @transform_1(%arg0: i32, %arg1: i32) -> (i32, i32, i32) {
    %c0_i32 = arith.constant 0 : i32
    %c0_i32_0 = arith.constant 0 : i32
    %c0_i32_1 = arith.constant 0 : i32
    return %c0_i32, %c0_i32_0, %arg0 : i32, i32, i32
  }
  func.func @transform_2(%arg0: i32, %arg1: i32) -> (i32, i32) {
    %c0_i32 = arith.constant 0 : i32
    %c0_i32_0 = arith.constant 0 : i32
    return %c0_i32, %arg0 : i32, i32
  }
  func.func @transform_3(%arg0: i32, %arg1: i32) -> (i32, i32, i32) {
    %c0_i32 = arith.constant 0 : i32
    %c0_i32_0 = arith.constant 0 : i32
    return %arg1, %c0_i32, %arg0 : i32, i32, i32
  }
}

</mosaic_0001>

<llo_original>
// kernel: squeeze.8
$region0: #{squeeze.8}
  %s0 = inlined_call_operand.vmem [shape: f32[2,3,21], index: 0, kind: input, shape index: {}]
  %s1 = inlined_call_operand.vmem [shape: f32[6,21], index: 1, kind: output, shape index: {}]
  $region1: #{squeeze.8} parent=0
    #allocation0 [shape = 'u8[8192]{0}', space=vmem, size = 0x2000, scoped, tag = 'scoped mem for input reshape']
    %s3 = ssub.s32 16, 1
    %s4 = scalar_lea.vmem %s0, 4
    %v5 = vld [vmem:[%s4] sm:%s3]
    %s6 = scalar_lea.vmem [#allocation0], 8
    %7 = vst [vmem:[%s6] sm:%s3] %v5
    %v8 = vld [vmem:[%s0] sm:%s3]
    %9 = vst [vmem:[#allocation0] sm:%s3] %v8
    %v10 = vld [vmem:[#allocation0] sm:$0x7]
    %vm11 = vcmask 171008
    %12 = vst.msk [vmem:[%s1] sm:$0x7] %vm11, %v10
    %s13 = scalar_lea.vmem [#allocation0], 8
    %v14 = vld [vmem:[%s13] sm:$0x7]
    %vm15 = vcmask 171008
    %s16 = scalar_lea.vmem %s1, 3
    %17 = vst.msk [vmem:[%s16] sm:$0x7] %vm15, %v14

// kernel: squeeze.9
$region0: #{squeeze.9}
  %s0 = inlined_call_operand.vmem [shape: f32[4,6], index: 0, kind: input, shape index: {}]
  %s1 = inlined_call_operand.vmem [shape: f32[4,2,3], index: 1, kind: output, shape index: {}]
  $region1: #{squeeze.9} parent=0
    #allocation0 [shape = 'u8[16384]{0}', space=vmem, size = 0x4000, scoped, tag = 'scoped mem for output reshape']
    #allocation1 [shape = 'u8[4096]{0}', space=vmem, size = 0x1000, scoped, tag = 'scoped mem for input reshape']
    %s3 = ssub.s32 16, 1
    %v4 = vld [vmem:[%s0] sm:%s3]
    %5 = vst [vmem:[#allocation1] sm:%s3] %v4
    %v6 = vld [vmem:[#allocation1] sm:$0xf]
    %vm7 = vcmask 23552
    %8 = vst.msk [vmem:[#allocation0] ss:$8 sm:$0xf] %vm7, %v6
    %v9 = vld [vmem:[#allocation1] sm:$0xf]
    %10 = vrot.lane.b32.xlu0 %v9, 125
    %v11 = vpop.permute.xlu0 %10
    %vm12 = vcmask 23552
    %s13 = scalar_lea.vmem [#allocation0], 1
    %14 = vst.msk [vmem:[%s13] ss:$8 sm:$0xf] %vm12, %v11
    %s16 = ssub.s32 4, 1
    %v17 = vld [vmem:[#allocation0] sm:%s16]
    %s19 = ssub.s32 4, 1
    %20 = vst [vmem:[%s1] sm:%s19] %v17
    %s21 = scalar_lea.vmem [#allocation0], 8
    %v22 = vld [vmem:[%s21] sm:%s16]
    %s24 = ssub.s32 4, 1
    %s25 = scalar_lea.vmem %s1, 2
    %26 = vst [vmem:[%s25] sm:%s24] %v22
    %s27 = scalar_lea.vmem [#allocation0], 16
    %v28 = vld [vmem:[%s27] sm:%s16]
    %s30 = ssub.s32 4, 1
    %s31 = scalar_lea.vmem %s1, 4
    %32 = vst [vmem:[%s31] sm:%s30] %v28
    %s33 = scalar_lea.vmem [#allocation0], 24
    %v34 = vld [vmem:[%s33] sm:%s16]
    %s36 = ssub.s32 4, 1
    %s37 = scalar_lea.vmem %s1, 6
    %38 = vst [vmem:[%s37] sm:%s36] %v34

// kernel: neg.4
$region0: #{neg.4}
  #allocation0 [shape = 's32[1]{0}', space=sflag, size = 0x4, scoped, tag = 'scoped memory for neg.4']
  %s0 = inlined_call_operand.vmem [shape: f32[4,2,3], index: 0, kind: input, shape index: {}]
  %s1 = inlined_call_operand.vmem [shape: f32[4,2,3], index: 1, kind: output, shape index: {}]
  %v2 = vld [vmem:[%s0] sm:$0xf]
  %3 = xla_tuple %v2
  %4 = xla_tuple %3
  %v5 = vxor.u32 %v2, 2147483648
  %6 = xla_tuple %v5
  %7 = vst [vmem:[%s1] sm:$0xf] %v5
  %s8 = scalar_lea.vmem %s0, 4
  %v9 = vld [vmem:[%s8] sm:$0xf]
  %10 = xla_tuple %v9
  %11 = xla_tuple %10
  %v12 = vxor.u32 %v9, 2147483648
  %13 = xla_tuple %v12
  %s14 = scalar_lea.vmem %s1, 4
  %15 = vst [vmem:[%s14] sm:$0xf] %v12
  %s16 = scalar_lea.vmem %s0, 8
  %v17 = vld [vmem:[%s16] sm:$0xf]
  %18 = xla_tuple %v17
  %19 = xla_tuple %18
  %v20 = vxor.u32 %v17, 2147483648
  %21 = xla_tuple %v20
  %s22 = scalar_lea.vmem %s1, 8
  %23 = vst [vmem:[%s22] sm:$0xf] %v20

// kernel: _criterion_train_metrics.1
$region0: #{_criterion_train_metrics.1}
  #allocation0 [shape = 'u32[]', space=smem, size = 0x4, offset = 0x4, fixed_abs, tag = 'smem constant byte address 0x4 - core index']
  #allocation1 [shape = 'u32[72,128]{1,0:T(1,128)}', space=vmem, size = 0x9000, scoped, tag = 'internal scratch']
  %s0 = inlined_call_operand.vmem [shape: f32[4,3,21,512], index: 0, kind: input, shape index: {}]
  %s1 = inlined_call_operand.vmem [shape: f32[3,21,512], index: 1, kind: input, shape index: {}]
  %s2 = inlined_call_operand.vmem [shape: f32[21,512], index: 2, kind: input, shape index: {}]
  %s3 = inlined_call_operand.vmem [shape: f32[4,1,512], index: 3, kind: output, shape index: {}]
  %s4 = sld [smem:[#allocation0]]
  $region45: #{_criterion_train_metrics.1} parent=0
    _
  %s6 = ssub.s32 1, %s4
  %s7 = scalar_select 0, %s6, %s4
  loop: start=0, step=1, limit=6
  $region2: #{_criterion_train_metrics.1} parent=0 // loop_pre_header
    _
  $region3: #{_criterion_train_metrics.1} parent=0 // loop_header
    %s9 = sphi 0, %s13
    %p10 = scmp.ge.s32.totalorder %s9, 6
    %s16 = sphi 0, %s28
    %s17 = sphi 0, %s24
    %s18 = sphi 0, %s16
    %s19 = sphi 0, %s17
    %s20 = sphi 0, %s18
    %s21 = sphi 0, %s19
    %s33 = sphi 0, %s35
    %s36 = sphi 0, %s33
    %s37 = sphi 0, %s36
    %s53 = sphi 0, %s37
    %s59 = sphi 0, %s61
    %s62 = sphi 0, %s59
    %s63 = sphi 0, %s62
    %s79 = sphi 0, %s63
    %s85 = sphi 0, %s87
    %s88 = sphi 0, %s85
    %s89 = sphi 0, %s88
    %s105 = sphi 0, %s89
    %s113 = sphi 0, %s115
    %s116 = sphi 0, %s113
    %s117 = sphi 0, %s116
    %s133 = sphi 0, %s117
  $region4: #{_criterion_train_metrics.1} parent=0 // loop_header_branch
    %12 = sbr.rel (%p10) target = $region8
  $region5: #{_criterion_train_metrics.1} parent=0 // loop_body
    %s14 = ssub.s32 %s9, 1
    %s15 = ssub.s32 %s9, 2
    %s22 = sadd.s32 1, %s17
    %p23 = scmp.ge.s32.totalorder %s22, 4
    %s24 = scalar_select %p23, 0, %s22
    %s25 = sadd.s32 1, %s16
    %s26 = scalar_select %p23, %s25, %s16
    %p27 = scmp.ge.s32.totalorder %s26, 1
    %s28 = scalar_select %p27, 0, %s26
    %s29 = ssub.s32 %s17, %s24
    %s30 = ssub.s32 %s16, %s28
    %s31 = sor.u32 %s29, %s30
    %p32 = scmp.eq.s32.totalorder %s31, 0
    %s34 = sadd.s32 %s33, 1
    %s35 = scalar_select %p32, %s33, %s34
    %p38 = pneg %p32
    %p39 = scmp.eq.s32.totalorder %s9, 3
    %p40 = por %p38, %p39
    %p41 = scmp.ne.s32.totalorder %s33, %s36
    %p42 = scmp.eq.s32.totalorder %s9, 0
    %p43 = por %p41, %p42
    %p44 = scmp.ne.s32.totalorder %s33, %s36
    %p45 = scmp.eq.s32.totalorder %s14, 3
    %p46 = por %p44, %p45
    %p47 = scmp.ne.s32.totalorder %s36, %s37
    %p48 = scmp.eq.s32.totalorder %s14, 0
    %p49 = por %p47, %p48
    %p50 = scmp.ne.s32.totalorder %s36, %s37
    %p51 = scmp.eq.s32.totalorder %s15, 3
    %p52 = por %p50, %p51
    %p54 = scmp.ne.s32.totalorder %s37, %s53
    %p55 = scmp.eq.s32.totalorder %s15, 0
    %p56 = por %p54, %p55
    %s57 = ssub.s32 %s16, %s28
    %p58 = scmp.eq.s32.totalorder %s57, 0
    %s60 = sadd.s32 %s59, 1
    %s61 = scalar_select %p58, %s59, %s60
    %p64 = pneg %p58
    %p65 = scmp.eq.s32.totalorder %s9, 3
    %p66 = por %p64, %p65
    %p67 = scmp.ne.s32.totalorder %s59, %s62
    %p68 = scmp.eq.s32.totalorder %s9, 0
    %p69 = por %p67, %p68
    %p70 = scmp.ne.s32.totalorder %s59, %s62
    %p71 = scmp.eq.s32.totalorder %s14, 3
    %p72 = por %p70, %p71
    %p73 = scmp.ne.s32.totalorder %s62, %s63
    %p74 = scmp.eq.s32.totalorder %s14, 0
    %p75 = por %p73, %p74
    %p76 = scmp.ne.s32.totalorder %s62, %s63
    %p77 = scmp.eq.s32.totalorder %s15, 3
    %p78 = por %p76, %p77
    %p80 = scmp.ne.s32.totalorder %s63, %s79
    %p81 = scmp.eq.s32.totalorder %s15, 0
    %p82 = por %p80, %p81
    %s83 = ssub.s32 %s16, %s28
    %p84 = scmp.eq.s32.totalorder %s83, 0
    %s86 = sadd.s32 %s85, 1
    %s87 = scalar_select %p84, %s85, %s86
    %p90 = pneg %p84
    %p91 = scmp.eq.s32.totalorder %s9, 3
    %p92 = por %p90, %p91
    %p93 = scmp.ne.s32.totalorder %s85, %s88
    %p94 = scmp.eq.s32.totalorder %s9, 0
    %p95 = por %p93, %p94
    %p96 = scmp.ne.s32.totalorder %s85, %s88
    %p97 = scmp.eq.s32.totalorder %s14, 3
    %p98 = por %p96, %p97
    %p99 = scmp.ne.s32.totalorder %s88, %s89
    %p100 = scmp.eq.s32.totalorder %s14, 0
    %p101 = por %p99, %p100
    %p102 = scmp.ne.s32.totalorder %s88, %s89
    %p103 = scmp.eq.s32.totalorder %s15, 3
    %p104 = por %p102, %p103
    %p106 = scmp.ne.s32.totalorder %s89, %s105
    %p107 = scmp.eq.s32.totalorder %s15, 0
    %p108 = por %p106, %p107
    %s109 = ssub.s32 %s17, %s24
    %s110 = ssub.s32 %s16, %s28
    %s111 = sor.u32 %s109, %s110
    %p112 = scmp.eq.s32.totalorder %s111, 0
    %s114 = sadd.s32 %s113, 1
    %s115 = scalar_select %p112, %s113, %s114
    %p118 = pneg %p112
    %p119 = scmp.eq.s32.totalorder %s9, 3
    %p120 = por %p118, %p119
    %p121 = scmp.ne.s32.totalorder %s113, %s116
    %p122 = scmp.eq.s32.totalorder %s9, 0
    %p123 = por %p121, %p122
    %p124 = scmp.ne.s32.totalorder %s113, %s116
    %p125 = scmp.eq.s32.totalorder %s14, 3
    %p126 = por %p124, %p125
    %p127 = scmp.ne.s32.totalorder %s116, %s117
    %p128 = scmp.eq.s32.totalorder %s14, 0
    %p129 = por %p127, %p128
    %p130 = scmp.ne.s32.totalorder %s116, %s117
    %p131 = scmp.eq.s32.totalorder %s15, 3
    %p132 = por %p130, %p131
    %p134 = scmp.ne.s32.totalorder %s117, %s133
    %p135 = scmp.eq.s32.totalorder %s15, 0
    %p136 = por %p134, %p135
    %p137 = scmp.le.s32.totalorder 1, %s9
    %p138 = scmp.lt.s32.totalorder %s9, 5
    %p139 = pnand %p137, %p138
    %p140 = pneg %p139
    // Predicated region
    $region9: #{_criterion_train_metrics.1} parent=5 // pred_check
      _
    $region10: #{_criterion_train_metrics.1} parent=5 // pred_check_branch
      %142 = sbr.rel (%p139) target = $region12
    $region11: #{_criterion_train_metrics.1} parent=5 // pred_region
      %s143 = ssub.s32 %s9, 1
      // Predicated region
      $region13: #{_criterion_train_metrics.1} parent=11 // pred_check
        %p144 = pneg %p75
      $region14: #{_criterion_train_metrics.1} parent=11 // pred_check_branch
        %146 = sbr.rel (%p144) target = $region16
      $region15: #{_criterion_train_metrics.1} parent=11 // pred_region
        %s147 = smul.u32 4, %s18
        %p148 = scmp.lt.s32.totalorder %s147, 3
        %s149 = scalar_select %p148, %s147, 3
        %s150 = smul.addr %s149, 8
        %s151 = scalar_lea.vmem %s1, %s150
        %s152 = smul.u32 4, %s18
      $region16: #{_criterion_train_metrics.1} parent=11 // pred_fallthru
        _
      // Predicated region
      $region17: #{_criterion_train_metrics.1} parent=11 // pred_check
        %p153 = pneg %p101
      $region18: #{_criterion_train_metrics.1} parent=11 // pred_check_branch
        %155 = sbr.rel (%p153) target = $region20
      $region19: #{_criterion_train_metrics.1} parent=11 // pred_region
        %s156 = smul.u32 4, %s18
        %p157 = scmp.lt.s32.totalorder %s156, 3
        %s158 = scalar_select %p157, %s156, 3
        %s159 = smul.addr %s158, 8
        %s160 = scalar_lea.vmem %s2, %s159
        %s161 = smul.u32 4, %s18
      $region20: #{_criterion_train_metrics.1} parent=11 // pred_fallthru
        _
    $region12: #{_criterion_train_metrics.1} parent=5 // pred_fallthru
      _
    %p162 = scmp.lt.s32.totalorder %s9, 4
    // Predicated region
    $region21: #{_criterion_train_metrics.1} parent=5 // pred_check
      %p163 = pneg %p162
    $region22: #{_criterion_train_metrics.1} parent=5 // pred_check_branch
      %165 = sbr.rel (%p163) target = $region24
    $region23: #{_criterion_train_metrics.1} parent=5 // pred_region
      // Predicated region
      $region25: #{_criterion_train_metrics.1} parent=23 // pred_check
        %p166 = pneg %p43
      $region26: #{_criterion_train_metrics.1} parent=23 // pred_check_branch
        %168 = sbr.rel (%p166) target = $region28
      $region27: #{_criterion_train_metrics.1} parent=23 // pred_region
        %s169 = smul.u32 4, %s16
        %p170 = scmp.lt.s32.totalorder %s17, 3
        %s171 = scalar_select %p170, %s17, 3
        %p172 = scmp.lt.s32.totalorder %s169, 3
        %s173 = scalar_select %p172, %s169, 3
        %s174 = smul.addr %s171, 36
        %s175 = sadd.s32 %s173, %s174
        %s176 = smul.addr %s175, 8
        %s177 = scalar_lea.vmem %s0, %s176
        %s178 = smul.u32 4, %s16
      $region28: #{_criterion_train_metrics.1} parent=23 // pred_fallthru
        _
    $region24: #{_criterion_train_metrics.1} parent=5 // pred_fallthru
      _
    %p179 = scmp.le.s32.totalorder 1, %s9
    %p180 = scmp.lt.s32.totalorder %s9, 5
    %p181 = pnand %p179, %p180
    %p182 = pneg %p181
    // Predicated region
    $region29: #{_criterion_train_metrics.1} parent=5 // pred_check
      _
    $region30: #{_criterion_train_metrics.1} parent=5 // pred_check_branch
      %184 = sbr.rel (%p181) target = $region32
    $region31: #{_criterion_train_metrics.1} parent=5 // pred_region
      %s185 = ssub.s32 %s9, 1
      %s186 = smul.u32 4, %s18
      %p187 = scmp.lt.s32.totalorder %s19, 3
      %s188 = scalar_select %p187, %s19, 3
      %p189 = scmp.lt.s32.totalorder %s186, 3
      %s190 = scalar_select %p189, %s186, 3
      %s191 = smul.addr %s188, 36
      %s192 = sadd.s32 %s190, %s191
      %s193 = smul.addr %s192, 8
      %s194 = scalar_lea.vmem %s0, %s193
      %p195 = pneg %p49
      %p196 = pneg %p46
      %s197 = smul.u32 4, %s18
      %p198 = scmp.lt.s32.totalorder %s197, 3
      %s199 = scalar_select %p198, %s197, 3
      %s200 = smul.addr %s199, 8
      %s201 = scalar_lea.vmem %s1, %s200
      %p202 = pneg %p75
      %p203 = pneg %p72
      %s204 = smul.u32 4, %s18
      %p205 = scmp.lt.s32.totalorder %s204, 3
      %s206 = scalar_select %p205, %s204, 3
      %s207 = smul.addr %s206, 8
      %s208 = scalar_lea.vmem %s2, %s207
      %p209 = pneg %p101
      %p210 = pneg %p98
      %p211 = pneg %p129
      %p212 = pneg %p126
      %s213 = smul.u32 4, %s18
      %p214 = scmp.lt.s32.totalorder %s19, 3
      %s215 = scalar_select %p214, %s19, 3
      %p216 = scmp.lt.s32.totalorder %s213, 3
      %s217 = scalar_select %p216, %s213, 3
      %s218 = smul.addr %s215, 4
      %s219 = sadd.s32 %s217, %s218
      %s220 = scalar_lea.vmem %s3, %s219
      %s221 = smul.u32 4, %s18
      %p222 = scmp.lt.s32.totalorder %s19, 3
      %s223 = scalar_select %p222, %s19, 3
      %p224 = scmp.lt.s32.totalorder %s221, 3
      %s225 = scalar_select %p224, %s221, 3
      %s226 = smul.addr %s223, 36
      %s227 = sadd.s32 %s225, %s226
      %s228 = smul.addr %s227, 8
      %s229 = scalar_lea.vmem %s0, %s228
      %s230 = smul.u32 4, %s18
      %s231 = smul.u32 4, %s18
      %p232 = scmp.lt.s32.totalorder %s231, 3
      %s233 = scalar_select %p232, %s231, 3
      %s234 = smul.addr %s233, 8
      %s235 = scalar_lea.vmem %s1, %s234
      %s236 = smul.u32 4, %s18
      %s237 = smul.u32 4, %s18
      %p238 = scmp.lt.s32.totalorder %s237, 3
      %s239 = scalar_select %p238, %s237, 3
      %s240 = smul.addr %s239, 8
      %s241 = scalar_lea.vmem %s2, %s240
      %s242 = smul.u32 4, %s18
      %s243 = smul.u32 4, %s18
      %p244 = scmp.lt.s32.totalorder %s19, 3
      %s245 = scalar_select %p244, %s19, 3
      %p246 = scmp.lt.s32.totalorder %s243, 3
      %s247 = scalar_select %p246, %s243, 3
      %s248 = smul.addr %s245, 4
      %s249 = sadd.s32 %s247, %s248
      %s250 = scalar_lea.vmem %s3, %s249
      %s251 = smul.u32 4, %s18
      %v252 = vld [vmem:[%s229] sm:$0xff]
      %v253 = vld [vmem:[%s229 + $0x8] sm:$0xff]
      %v254 = vld [vmem:[%s229 + $0x10] sm:$0xff]
      %v255 = vld [vmem:[%s229 + $0x18] sm:$0xff]
      %v256 = vld [vmem:[%s229 + $0x20] sm:$0xff]
      %v257 = vld [vmem:[%s229 + $0x28] sm:$0xff]
      %v258 = vld [vmem:[%s229 + $0x30] sm:$0xff]
      %v259 = vld [vmem:[%s229 + $0x38] sm:$0xff]
      %v260 = vld [vmem:[%s229 + $0x40] sm:$0x1f]
      %v261 = vld [vmem:[%s229 + $0x48] sm:$0x1f]
      %v262 = vld [vmem:[%s229 + $0x50] sm:$0x1f]
      %v263 = vld [vmem:[%s229 + $0x58] sm:$0x1f]
      %v264 = vld [vmem:[%s229 + $0x60] sm:$0xff]
      %v265 = vld [vmem:[%s229 + $0x68] sm:$0xff]
      %v266 = vld [vmem:[%s229 + $0x70] sm:$0xff]
      %v267 = vld [vmem:[%s229 + $0x78] sm:$0xff]
      %v268 = vld [vmem:[%s229 + $0x80] sm:$0xff]
      %v269 = vld [vmem:[%s229 + $0x88] sm:$0xff]
      %v270 = vld [vmem:[%s229 + $0x90] sm:$0xff]
      %v271 = vld [vmem:[%s229 + $0x98] sm:$0xff]
      %v272 = vld [vmem:[%s229 + $0xa0] sm:$0x1f]
      %v273 = vld [vmem:[%s229 + $0xa8] sm:$0x1f]
      %v274 = vld [vmem:[%s229 + $0xb0] sm:$0x1f]
      %v275 = vld [vmem:[%s229 + $0xb8] sm:$0x1f]
      %v276 = vld [vmem:[%s229 + $0xc0] sm:$0xff]
      %v277 = vld [vmem:[%s229 + $0xc8] sm:$0xff]
      %v278 = vld [vmem:[%s229 + $0xd0] sm:$0xff]
      %v279 = vld [vmem:[%s229 + $0xd8] sm:$0xff]
      %v280 = vld [vmem:[%s229 + $0xe0] sm:$0xff]
      %v281 = vld [vmem:[%s229 + $0xe8] sm:$0xff]
      %v282 = vld [vmem:[%s229 + $0xf0] sm:$0xff]
      %v283 = vld [vmem:[%s229 + $0xf8] sm:$0xff]
      %v284 = vld [vmem:[%s229 + $0x100] sm:$0x1f]
      %v285 = vld [vmem:[%s229 + $0x108] sm:$0x1f]
      %v286 = vld [vmem:[%s229 + $0x110] sm:$0x1f]
      %v287 = vld [vmem:[%s229 + $0x118] sm:$0x1f]
      %v288 = vld [vmem:[%s235] sm:$0xff]
      %v289 = vld [vmem:[%s235 + $0x8] sm:$0xff]
      %v290 = vld [vmem:[%s235 + $0x10] sm:$0xff]
      %v291 = vld [vmem:[%s235 + $0x18] sm:$0xff]
      %v292 = vld [vmem:[%s235 + $0x20] sm:$0xff]
      %v293 = vld [vmem:[%s235 + $0x28] sm:$0xff]
      %v294 = vld [vmem:[%s235 + $0x30] sm:$0xff]
      %v295 = vld [vmem:[%s235 + $0x38] sm:$0xff]
      %v296 = vld [vmem:[%s235 + $0x40] sm:$0x1f]
      %v297 = vld [vmem:[%s235 + $0x48] sm:$0x1f]
      %v298 = vld [vmem:[%s235 + $0x50] sm:$0x1f]
      %v299 = vld [vmem:[%s235 + $0x58] sm:$0x1f]
      %v300 = vld [vmem:[%s235 + $0x60] sm:$0xff]
      %v301 = vld [vmem:[%s235 + $0x68] sm:$0xff]
      %v302 = vld [vmem:[%s235 + $0x70] sm:$0xff]
      %v303 = vld [vmem:[%s235 + $0x78] sm:$0xff]
      %v304 = vld [vmem:[%s235 + $0x80] sm:$0xff]
      %v305 = vld [vmem:[%s235 + $0x88] sm:$0xff]
      %v306 = vld [vmem:[%s235 + $0x90] sm:$0xff]
      %v307 = vld [vmem:[%s235 + $0x98] sm:$0xff]
      %v308 = vld [vmem:[%s235 + $0xa0] sm:$0x1f]
      %v309 = vld [vmem:[%s235 + $0xa8] sm:$0x1f]
      %v310 = vld [vmem:[%s235 + $0xb0] sm:$0x1f]
      %v311 = vld [vmem:[%s235 + $0xb8] sm:$0x1f]
      %v312 = vld [vmem:[%s235 + $0xc0] sm:$0xff]
      %v313 = vld [vmem:[%s235 + $0xc8] sm:$0xff]
      %v314 = vld [vmem:[%s235 + $0xd0] sm:$0xff]
      %v315 = vld [vmem:[%s235 + $0xd8] sm:$0xff]
      %v316 = vld [vmem:[%s235 + $0xe0] sm:$0xff]
      %v317 = vld [vmem:[%s235 + $0xe8] sm:$0xff]
      %v318 = vld [vmem:[%s235 + $0xf0] sm:$0xff]
      %v319 = vld [vmem:[%s235 + $0xf8] sm:$0xff]
      %v320 = vld [vmem:[%s235 + $0x100] sm:$0x1f]
      %v321 = vld [vmem:[%s235 + $0x108] sm:$0x1f]
      %v322 = vld [vmem:[%s235 + $0x110] sm:$0x1f]
      %v323 = vld [vmem:[%s235 + $0x118] sm:$0x1f]
      %v324 = vld [vmem:[%s241] sm:$0xff]
      %v325 = vld [vmem:[%s241 + $0x8] sm:$0xff]
      %v326 = vld [vmem:[%s241 + $0x10] sm:$0xff]
      %v327 = vld [vmem:[%s241 + $0x18] sm:$0xff]
      %v328 = vld [vmem:[%s241 + $0x20] sm:$0xff]
      %v329 = vld [vmem:[%s241 + $0x28] sm:$0xff]
      %v330 = vld [vmem:[%s241 + $0x30] sm:$0xff]
      %v331 = vld [vmem:[%s241 + $0x38] sm:$0xff]
      %v332 = vld [vmem:[%s241 + $0x40] sm:$0x1f]
      %v333 = vld [vmem:[%s241 + $0x48] sm:$0x1f]
      %v334 = vld [vmem:[%s241 + $0x50] sm:$0x1f]
      %v335 = vld [vmem:[%s241 + $0x58] sm:$0x1f]
      %v336 = vsub.f32 %v252, %v288
      %v337 = vsub.f32 %v253, %v289
      %v338 = vsub.f32 %v254, %v290
      %v339 = vsub.f32 %v255, %v291
      %v340 = vsub.f32 %v256, %v292
      %v341 = vsub.f32 %v257, %v293
      %v342 = vsub.f32 %v258, %v294
      %v343 = vsub.f32 %v259, %v295
      %v344 = vsub.f32 %v260, %v296
      %v345 = vsub.f32 %v261, %v297
      %v346 = vsub.f32 %v262, %v298
      %v347 = vsub.f32 %v263, %v299
      %v348 = vsub.f32 %v264, %v300
      %v349 = vsub.f32 %v265, %v301
      %v350 = vsub.f32 %v266, %v302
      %v351 = vsub.f32 %v267, %v303
      %v352 = vsub.f32 %v268, %v304
      %v353 = vsub.f32 %v269, %v305
      %v354 = vsub.f32 %v270, %v306
      %v355 = vsub.f32 %v271, %v307
      %v356 = vsub.f32 %v272, %v308
      %v357 = vsub.f32 %v273, %v309
      %v358 = vsub.f32 %v274, %v310
      %v359 = vsub.f32 %v275, %v311
      %v360 = vsub.f32 %v276, %v312
      %v361 = vsub.f32 %v277, %v313
      %v362 = vsub.f32 %v278, %v314
      %v363 = vsub.f32 %v279, %v315
      %v364 = vsub.f32 %v280, %v316
      %v365 = vsub.f32 %v281, %v317
      %v366 = vsub.f32 %v282, %v318
      %v367 = vsub.f32 %v283, %v319
      %v368 = vsub.f32 %v284, %v320
      %v369 = vsub.f32 %v285, %v321
      %v370 = vsub.f32 %v286, %v322
      %v371 = vsub.f32 %v287, %v323
      %v372 = vmul.f32 %v336, %v336
      %v373 = vmul.f32 %v337, %v337
      %v374 = vmul.f32 %v338, %v338
      %v375 = vmul.f32 %v339, %v339
      %v376 = vmul.f32 %v340, %v340
      %v377 = vmul.f32 %v341, %v341
      %v378 = vmul.f32 %v342, %v342
      %v379 = vmul.f32 %v343, %v343
      %v380 = vmul.f32 %v344, %v344
      %v381 = vmul.f32 %v345, %v345
      %v382 = vmul.f32 %v346, %v346
      %v383 = vmul.f32 %v347, %v347
      %v384 = vmul.f32 %v348, %v348
      %v385 = vmul.f32 %v349, %v349
      %v386 = vmul.f32 %v350, %v350
      %v387 = vmul.f32 %v351, %v351
      %v388 = vmul.f32 %v352, %v352
      %v389 = vmul.f32 %v353, %v353
      %v390 = vmul.f32 %v354, %v354
      %v391 = vmul.f32 %v355, %v355
      %v392 = vmul.f32 %v356, %v356
      %v393 = vmul.f32 %v357, %v357
      %v394 = vmul.f32 %v358, %v358
      %v395 = vmul.f32 %v359, %v359
      %v396 = vadd.f32 %v372, %v384
      %v397 = vadd.f32 %v373, %v385
      %v398 = vadd.f32 %v374, %v386
      %v399 = vadd.f32 %v375, %v387
      %v400 = vadd.f32 %v376, %v388
      %v401 = vadd.f32 %v377, %v389
      %v402 = vadd.f32 %v378, %v390
      %v403 = vadd.f32 %v379, %v391
      %v404 = vadd.f32 %v380, %v392
      %v405 = vadd.f32 %v381, %v393
      %v406 = vadd.f32 %v382, %v394
      %v407 = vadd.f32 %v383, %v395
      %v408 = vmul.f32 %v360, %v360
      %v409 = vmul.f32 %v361, %v361
      %v410 = vmul.f32 %v362, %v362
      %v411 = vmul.f32 %v363, %v363
      %v412 = vmul.f32 %v364, %v364
      %v413 = vmul.f32 %v365, %v365
      %v414 = vmul.f32 %v366, %v366
      %v415 = vmul.f32 %v367, %v367
      %v416 = vmul.f32 %v368, %v368
      %v417 = vmul.f32 %v369, %v369
      %v418 = vmul.f32 %v370, %v370
      %v419 = vmul.f32 %v371, %v371
      %v420 = vadd.f32 %v396, %v408
      %v421 = vadd.f32 %v397, %v409
      %v422 = vadd.f32 %v398, %v410
      %v423 = vadd.f32 %v399, %v411
      %v424 = vadd.f32 %v400, %v412
      %v425 = vadd.f32 %v401, %v413
      %v426 = vadd.f32 %v402, %v414
      %v427 = vadd.f32 %v403, %v415
      %v428 = vadd.f32 %v404, %v416
      %v429 = vadd.f32 %v405, %v417
      %v430 = vadd.f32 %v406, %v418
      %v431 = vadd.f32 %v407, %v419
      %v432 = vrsqrt.pop %v420
      %v433 = vmul.f32 %v432, %v420
      %v434 = vmul.f32 %v433, %v432
      %v435 = vmul.f32 0.5, %v434
      %v436 = vsub.f32 1.5, %v435
      %v437 = vmul.f32 %v432, %v436
      %v438 = vmul.f32 %v420, %v437
      %vm439 = vcmp.eq.f32.partialorder %v420, inf
      %v440 = vsel %vm439, %v420, %v438
      %vm441 = vcmp.eq.f32.partialorder %v420, 0.0
      %v442 = vand.u32 %v420, 2147483648
      %v443 = vsel %vm441, %v442, %v440
      %v444 = vrsqrt.pop %v421
      %v445 = vmul.f32 %v444, %v421
      %v446 = vmul.f32 %v445, %v444
      %v447 = vmul.f32 0.5, %v446
      %v448 = vsub.f32 1.5, %v447
      %v449 = vmul.f32 %v444, %v448
      %v450 = vmul.f32 %v421, %v449
      %vm451 = vcmp.eq.f32.partialorder %v421, inf
      %v452 = vsel %vm451, %v421, %v450
      %vm453 = vcmp.eq.f32.partialorder %v421, 0.0
      %v454 = vand.u32 %v421, 2147483648
      %v455 = vsel %vm453, %v454, %v452
      %v456 = vrsqrt.pop %v422
      %v457 = vmul.f32 %v456, %v422
      %v458 = vmul.f32 %v457, %v456
      %v459 = vmul.f32 0.5, %v458
      %v460 = vsub.f32 1.5, %v459
      %v461 = vmul.f32 %v456, %v460
      %v462 = vmul.f32 %v422, %v461
      %vm463 = vcmp.eq.f32.partialorder %v422, inf
      %v464 = vsel %vm463, %v422, %v462
      %vm465 = vcmp.eq.f32.partialorder %v422, 0.0
      %v466 = vand.u32 %v422, 2147483648
      %v467 = vsel %vm465, %v466, %v464
      %v468 = vrsqrt.pop %v423
      %v469 = vmul.f32 %v468, %v423
      %v470 = vmul.f32 %v469, %v468
      %v471 = vmul.f32 0.5, %v470
      %v472 = vsub.f32 1.5, %v471
      %v473 = vmul.f32 %v468, %v472
      %v474 = vmul.f32 %v423, %v473
      %vm475 = vcmp.eq.f32.partialorder %v423, inf
      %v476 = vsel %vm475, %v423, %v474
      %vm477 = vcmp.eq.f32.partialorder %v423, 0.0
      %v478 = vand.u32 %v423, 2147483648
      %v479 = vsel %vm477, %v478, %v476
      %v480 = vrsqrt.pop %v424
      %v481 = vmul.f32 %v480, %v424
      %v482 = vmul.f32 %v481, %v480
      %v483 = vmul.f32 0.5, %v482
      %v484 = vsub.f32 1.5, %v483
      %v485 = vmul.f32 %v480, %v484
      %v486 = vmul.f32 %v424, %v485
      %vm487 = vcmp.eq.f32.partialorder %v424, inf
      %v488 = vsel %vm487, %v424, %v486
      %vm489 = vcmp.eq.f32.partialorder %v424, 0.0
      %v490 = vand.u32 %v424, 2147483648
      %v491 = vsel %vm489, %v490, %v488
      %v492 = vrsqrt.pop %v425
      %v493 = vmul.f32 %v492, %v425
      %v494 = vmul.f32 %v493, %v492
      %v495 = vmul.f32 0.5, %v494
      %v496 = vsub.f32 1.5, %v495
      %v497 = vmul.f32 %v492, %v496
      %v498 = vmul.f32 %v425, %v497
      %vm499 = vcmp.eq.f32.partialorder %v425, inf
      %v500 = vsel %vm499, %v425, %v498
      %vm501 = vcmp.eq.f32.partialorder %v425, 0.0
      %v502 = vand.u32 %v425, 2147483648
      %v503 = vsel %vm501, %v502, %v500
      %v504 = vrsqrt.pop %v426
      %v505 = vmul.f32 %v504, %v426
      %v506 = vmul.f32 %v505, %v504
      %v507 = vmul.f32 0.5, %v506
      %v508 = vsub.f32 1.5, %v507
      %v509 = vmul.f32 %v504, %v508
      %v510 = vmul.f32 %v426, %v509
      %vm511 = vcmp.eq.f32.partialorder %v426, inf
      %v512 = vsel %vm511, %v426, %v510
      %vm513 = vcmp.eq.f32.partialorder %v426, 0.0
      %v514 = vand.u32 %v426, 2147483648
      %v515 = vsel %vm513, %v514, %v512
      %v516 = vrsqrt.pop %v427
      %v517 = vmul.f32 %v516, %v427
      %v518 = vmul.f32 %v517, %v516
      %v519 = vmul.f32 0.5, %v518
      %v520 = vsub.f32 1.5, %v519
      %v521 = vmul.f32 %v516, %v520
      %v522 = vmul.f32 %v427, %v521
      %vm523 = vcmp.eq.f32.partialorder %v427, inf
      %v524 = vsel %vm523, %v427, %v522
      %vm525 = vcmp.eq.f32.partialorder %v427, 0.0
      %v526 = vand.u32 %v427, 2147483648
      %v527 = vsel %vm525, %v526, %v524
      %v528 = vrsqrt.pop %v428
      %v529 = vmul.f32 %v528, %v428
      %v530 = vmul.f32 %v529, %v528
      %v531 = vmul.f32 0.5, %v530
      %v532 = vsub.f32 1.5, %v531
      %v533 = vmul.f32 %v528, %v532
      %v534 = vmul.f32 %v428, %v533
      %vm535 = vcmp.eq.f32.partialorder %v428, inf
      %v536 = vsel %vm535, %v428, %v534
      %vm537 = vcmp.eq.f32.partialorder %v428, 0.0
      %v538 = vand.u32 %v428, 2147483648
      %v539 = vsel %vm537, %v538, %v536
      %v540 = vrsqrt.pop %v429
      %v541 = vmul.f32 %v540, %v429
      %v542 = vmul.f32 %v541, %v540
      %v543 = vmul.f32 0.5, %v542
      %v544 = vsub.f32 1.5, %v543
      %v545 = vmul.f32 %v540, %v544
      %v546 = vmul.f32 %v429, %v545
      %vm547 = vcmp.eq.f32.partialorder %v429, inf
      %v548 = vsel %vm547, %v429, %v546
      %vm549 = vcmp.eq.f32.partialorder %v429, 0.0
      %v550 = vand.u32 %v429, 2147483648
      %v551 = vsel %vm549, %v550, %v548
      %v552 = vrsqrt.pop %v430
      %v553 = vmul.f32 %v552, %v430
      %v554 = vmul.f32 %v553, %v552
      %v555 = vmul.f32 0.5, %v554
      %v556 = vsub.f32 1.5, %v555
      %v557 = vmul.f32 %v552, %v556
      %v558 = vmul.f32 %v430, %v557
      %vm559 = vcmp.eq.f32.partialorder %v430, inf
      %v560 = vsel %vm559, %v430, %v558
      %vm561 = vcmp.eq.f32.partialorder %v430, 0.0
      %v562 = vand.u32 %v430, 2147483648
      %v563 = vsel %vm561, %v562, %v560
      %v564 = vrsqrt.pop %v431
      %v565 = vmul.f32 %v564, %v431
      %v566 = vmul.f32 %v565, %v564
      %v567 = vmul.f32 0.5, %v566
      %v568 = vsub.f32 1.5, %v567
      %v569 = vmul.f32 %v564, %v568
      %v570 = vmul.f32 %v431, %v569
      %vm571 = vcmp.eq.f32.partialorder %v431, inf
      %v572 = vsel %vm571, %v431, %v570
      %vm573 = vcmp.eq.f32.partialorder %v431, 0.0
      %v574 = vand.u32 %v431, 2147483648
      %v575 = vsel %vm573, %v574, %v572
      %v576 = vmul.f32 %v443, 1000.0
      %v577 = vmul.f32 %v455, 1000.0
      %v578 = vmul.f32 %v467, 1000.0
      %v579 = vmul.f32 %v479, 1000.0
      %v580 = vmul.f32 %v491, 1000.0
      %v581 = vmul.f32 %v503, 1000.0
      %v582 = vmul.f32 %v515, 1000.0
      %v583 = vmul.f32 %v527, 1000.0
      %v584 = vmul.f32 %v539, 1000.0
      %v585 = vmul.f32 %v551, 1000.0
      %v586 = vmul.f32 %v563, 1000.0
      %v587 = vmul.f32 %v575, 1000.0
      %v588 = vadd.f32 %v324, %v328
      %vm589 = vcmask 1044480
      %v590 = vsel %vm589, %v332, 0.0
      %v591 = vadd.f32 %v588, %v590
      %v592 = vrot.slane %v591, 4
      %v593 = vadd.f32 %v591, %v592
      %v594 = vrot.slane %v593, 2
      %v595 = vadd.f32 %v593, %v594
      %v596 = vrot.slane %v595, 1
      %v597 = vadd.f32 %v595, %v596
      %v598 = vadd.f32 %v325, %v329
      %v599 = vsel %vm589, %v333, 0.0
      %v600 = vadd.f32 %v598, %v599
      %v601 = vrot.slane %v600, 4
      %v602 = vadd.f32 %v600, %v601
      %v603 = vrot.slane %v602, 2
      %v604 = vadd.f32 %v602, %v603
      %v605 = vrot.slane %v604, 1
      %v606 = vadd.f32 %v604, %v605
      %v607 = vadd.f32 %v326, %v330
      %v608 = vsel %vm589, %v334, 0.0
      %v609 = vadd.f32 %v607, %v608
      %v610 = vrot.slane %v609, 4
      %v611 = vadd.f32 %v609, %v610
      %v612 = vrot.slane %v611, 2
      %v613 = vadd.f32 %v611, %v612
      %v614 = vrot.slane %v613, 1
      %v615 = vadd.f32 %v613, %v614
      %v616 = vadd.f32 %v327, %v331
      %v617 = vsel %vm589, %v335, 0.0
      %v618 = vadd.f32 %v616, %v617
      %v619 = vrot.slane %v618, 4
      %v620 = vadd.f32 %v618, %v619
      %v621 = vrot.slane %v620, 2
      %v622 = vadd.f32 %v620, %v621
      %v623 = vrot.slane %v622, 1
      %v624 = vadd.f32 %v622, %v623
      %v625 = vmax.f32 %v597, 1.0
      %v626 = vmax.f32 %v606, 1.0
      %v627 = vmax.f32 %v615, 1.0
      %v628 = vmax.f32 %v624, 1.0
      %v629 = vrcp.pop %v625
      %v630 = vrcp.pop %v626
      %v631 = vrcp.pop %v627
      %v632 = vrcp.pop %v628
      %vm633 = vcmp.gt.f32.partialorder %v597, 0.0
      %vm634 = vcmp.gt.f32.partialorder %v606, 0.0
      %vm635 = vcmp.gt.f32.partialorder %v615, 0.0
      %vm636 = vcmp.gt.f32.partialorder %v624, 0.0
      %v637 = vmul.f32 %v576, %v324
      %v638 = vmul.f32 %v577, %v325
      %v639 = vmul.f32 %v578, %v326
      %v640 = vmul.f32 %v579, %v327
      %v641 = vmul.f32 %v580, %v328
      %v642 = vmul.f32 %v581, %v329
      %v643 = vmul.f32 %v582, %v330
      %v644 = vmul.f32 %v583, %v331
      %v645 = vmul.f32 %v584, %v332
      %v646 = vmul.f32 %v585, %v333
      %v647 = vmul.f32 %v586, %v334
      %v648 = vmul.f32 %v587, %v335
      %v649 = vadd.f32 %v637, %v641
      %v650 = vsel %vm589, %v645, 0.0
      %v651 = vadd.f32 %v649, %v650
      %v652 = vrot.slane %v651, 4
      %v653 = vadd.f32 %v651, %v652
      %v654 = vrot.slane %v653, 2
      %v655 = vadd.f32 %v653, %v654
      %v656 = vrot.slane %v655, 1
      %v657 = vadd.f32 %v655, %v656
      %v658 = vadd.f32 %v638, %v642
      %v659 = vsel %vm589, %v646, 0.0
      %v660 = vadd.f32 %v658, %v659
      %v661 = vrot.slane %v660, 4
      %v662 = vadd.f32 %v660, %v661
      %v663 = vrot.slane %v662, 2
      %v664 = vadd.f32 %v662, %v663
      %v665 = vrot.slane %v664, 1
      %v666 = vadd.f32 %v664, %v665
      %v667 = vadd.f32 %v639, %v643
      %v668 = vsel %vm589, %v647, 0.0
      %v669 = vadd.f32 %v667, %v668
      %v670 = vrot.slane %v669, 4
      %v671 = vadd.f32 %v669, %v670
      %v672 = vrot.slane %v671, 2
      %v673 = vadd.f32 %v671, %v672
      %v674 = vrot.slane %v673, 1
      %v675 = vadd.f32 %v673, %v674
      %v676 = vadd.f32 %v640, %v644
      %v677 = vsel %vm589, %v648, 0.0
      %v678 = vadd.f32 %v676, %v677
      %v679 = vrot.slane %v678, 4
      %v680 = vadd.f32 %v678, %v679
      %v681 = vrot.slane %v680, 2
      %v682 = vadd.f32 %v680, %v681
      %v683 = vrot.slane %v682, 1
      %v684 = vadd.f32 %v682, %v683
      %v685 = vmul.f32 %v657, %v629
      %v686 = vmul.f32 %v666, %v630
      %v687 = vmul.f32 %v675, %v631
      %v688 = vmul.f32 %v684, %v632
      %v689 = vsel %vm633, %v685, nan
      %v690 = vsel %vm634, %v686, nan
      %v691 = vsel %vm635, %v687, nan
      %v692 = vsel %vm636, %v688, nan
      %v697 = vrot.slane %v690, 7
      %v698 = vrot.slane %v691, 6
      %v699 = vrot.slane %v692, 5
      %vm700 = vcmask 1040384
      %v701 = vsel %vm700, %v689, %v697
      %vm702 = vcmask 1042434
      %v703 = vsel %vm702, %v698, %v699
      %vm704 = vcmask 1041408
      %v705 = vsel %vm704, %v701, %v703
      %v707 = vlaneseq
      %vm708 = vcmp.ge.s32.totalorder %v707, 0
      %vm709 = vcmp.lt.s32.totalorder %v707, 512
      %vm710 = vmand %vm708, %vm709
      %711 = vst.msk [vmem:[%s250] sm:$0xf] %vm710, %v705
      %s712 = smul.u32 4, %s18
      %p713 = scmp.lt.s32.totalorder %s19, 3
      %s714 = scalar_select %p713, %s19, 3
      %p715 = scmp.lt.s32.totalorder %s712, 3
      %s716 = scalar_select %p715, %s712, 3
      %s717 = smul.addr %s714, 4
      %s718 = sadd.s32 %s716, %s717
      %s719 = scalar_lea.vmem %s3, %s718
      // Predicated region
      $region33: #{_criterion_train_metrics.1} parent=31 // pred_check
        %p720 = pneg %p126
      $region34: #{_criterion_train_metrics.1} parent=31 // pred_check_branch
        %722 = sbr.rel (%p720) target = $region36
      $region35: #{_criterion_train_metrics.1} parent=31 // pred_region
        %s723 = smul.u32 4, %s18
      $region36: #{_criterion_train_metrics.1} parent=31 // pred_fallthru
        _
    $region32: #{_criterion_train_metrics.1} parent=5 // pred_fallthru
      _
    %p724 = scmp.le.s32.totalorder 2, %s9
    // Predicated region
    $region37: #{_criterion_train_metrics.1} parent=5 // pred_check
      %p725 = pneg %p724
    $region38: #{_criterion_train_metrics.1} parent=5 // pred_check_branch
      %727 = sbr.rel (%p725) target = $region40
    $region39: #{_criterion_train_metrics.1} parent=5 // pred_region
      %s728 = ssub.s32 %s9, 2
      // Predicated region
      $region41: #{_criterion_train_metrics.1} parent=39 // pred_check
        %p729 = pneg %p132
      $region42: #{_criterion_train_metrics.1} parent=39 // pred_check_branch
        %731 = sbr.rel (%p729) target = $region44
      $region43: #{_criterion_train_metrics.1} parent=39 // pred_region
        %s732 = smul.u32 4, %s20
        %p733 = scmp.lt.s32.totalorder %s21, 3
        %s734 = scalar_select %p733, %s21, 3
        %p735 = scmp.lt.s32.totalorder %s732, 3
        %s736 = scalar_select %p735, %s732, 3
        %s737 = smul.addr %s734, 4
        %s738 = sadd.s32 %s736, %s737
        %s739 = scalar_lea.vmem %s3, %s738
      $region44: #{_criterion_train_metrics.1} parent=39 // pred_fallthru
        _
    $region40: #{_criterion_train_metrics.1} parent=5 // pred_fallthru
      _
  $region6: #{_criterion_train_metrics.1} parent=0 // loop_footer
    %s13 = sadd.s32 1, %s9
  $region7: #{_criterion_train_metrics.1} parent=0 // loop_footer_branch
    %8 = sbr.rel target = $region3
  $region8: #{_criterion_train_metrics.1} parent=0 // loop_exit
    _

</llo_original>
